<compile_context>
chip_gen: v7x
topology: tpu7x:2x2x1
jax: 0.10.0
libtpu: 0.0.40
codegen_flags: <defaults>
</compile_context>

<pallas_src>
import functools

import jax
import jax.numpy as jnp
from jax.experimental import pallas as pl
from jax.experimental.pallas import tpu as pltpu


# ---------------------------------------------------------------------------
# Hardware helpers
# ---------------------------------------------------------------------------

def _num_tensorcores():
    """Best-effort TensorCore count of the local device (2 on v7x megachip)."""
    try:
        d = jax.local_devices()[0]
        for attr in ("num_cores", "core_count"):
            n = getattr(d, attr, None)
            if isinstance(n, int) and n > 0:
                return n
    except Exception:
        pass
    return 1


def _vmem_limit_bytes():
    """Scoped-VMEM budget: ~3/4 of physical, capped at 96 MiB.
    -> ~96 MiB on v5e/v6e (128 MiB physical), ~48 MiB on v7x (64 MiB physical).
    Falls back to 32 MiB if the query is unavailable."""
    try:
        cap = pltpu.get_tpu_info().vmem_capacity_bytes
        return int(min(cap * 3 // 4, 96 * 1024 * 1024))
    except Exception:
        return 32 * 1024 * 1024


def default_trans_dtype():
    """bf16 transcendentals on v6e/v7x (EUP bf16 path ~2x); f32 on v5e
    (no bf16 VPU/EUP -> converts would only add VPU work)."""
    try:
        kind = jax.local_devices()[0].device_kind.lower()
    except Exception:
        return jnp.float32
    if "v5 lite" in kind or "v5e" in kind or "v5lite" in kind:
        return jnp.float32
    if "v6" in kind or "v7" in kind:
        return jnp.bfloat16
    return jnp.float32


def _round_up(x, m):
    return ((x + m - 1) // m) * m


def _pick_batch_tile(B, num_cores):
    """Batch tile: multiple of 8, <=256 (MXU rows), and small enough that the
    'parallel' batch grid axis has >= num_cores points (v7x megacore)."""
    if B % 8 != 0:
        return B                       # small/ragged batch: one full block
    tb = min(B, 256)
    if num_cores > 1:
        tb = min(tb, max(8, _round_up(pl.cdiv(B, num_cores), 8)))
    return tb


# ---------------------------------------------------------------------------
# Shared in-kernel math (one AttentionCell step on in-VMEM values)
# ---------------------------------------------------------------------------

def _attention_cell_math(h, c, bhp, batch_H, onehots,
                         w_h2h, b_h2h, w_score_row, w_gates, b_gates,
                         trans_dtype):
    """State math in f32; MXU operands cast to the weights' dtype;
    transcendentals in trans_dtype (bf16 on v6e/v7x, f32 on v5e)."""
    Hs = h.shape[-1]
    compute_dtype = w_gates.dtype

    # prev_hidden_proj = h2h(h) : (TB, H)
    php = jnp.dot(h.astype(w_h2h.dtype), w_h2h,
                  preferred_element_type=jnp.float32) + b_h2h

    # e[b,t] = sum_h tanh(bhp[b,t,h] + php[b,h]) * w_score[h]
    # N=1 "matmul" done as VPU multiply + lane reduce; the tanh over (TB,T,H)
    # is the dominant EUP load and runs in trans_dtype.
    s = bhp.astype(jnp.float32) + php[:, None, :]                      # (TB,T,H)
    t = jnp.tanh(s.astype(trans_dtype)).astype(jnp.float32)
    e = jnp.sum(t * w_score_row.reshape(1, 1, Hs), axis=-1)            # (TB,T)

    # softmax over T (lane axis).  Exact division: alpha is consumed as a
    # probability distribution; the cost is negligible next to the tanh volume.
    e_max = jnp.max(e, axis=-1, keepdims=True)
    ex = jnp.exp(e - e_max)
    alpha = ex / jnp.sum(ex, axis=-1, keepdims=True)                   # (TB,T)

    # context[b,i] = sum_t alpha[b,t] * batch_H[b,t,i]
    context = jnp.sum(alpha[:, :, None] * batch_H.astype(jnp.float32), axis=1)

    # Fused LSTMCell gates: one (TB, I+H+E) @ (I+H+E, 4H) matmul.
    # x_cat order [context, h, onehots] keeps the two 128-aligned pieces
    # lane-aligned even when E is ragged.
    # TODO(synk): a further win is to drop the one-hot columns entirely by
    # scalar-prefetching char ids and gathering the matching (1,4H) rows.
    x_cat = jnp.concatenate([context, h, onehots], axis=-1)
    gates = jnp.dot(x_cat.astype(compute_dtype), w_gates,
                    preferred_element_type=jnp.float32) + b_gates       # (TB,4H)

    g = gates.astype(trans_dtype)
    i_g = jax.nn.sigmoid(g[:, 0 * Hs:1 * Hs]).astype(jnp.float32)
    f_g = jax.nn.sigmoid(g[:, 1 * Hs:2 * Hs]).astype(jnp.float32)
    g_g = jnp.tanh(g[:, 2 * Hs:3 * Hs]).astype(jnp.float32)
    o_g = jax.nn.sigmoid(g[:, 3 * Hs:4 * Hs]).astype(jnp.float32)

    c_new = f_g * c + i_g * g_g
    h_new = o_g * jnp.tanh(c_new)
    return h_new, c_new, alpha


# ---------------------------------------------------------------------------
# Kernels
# ---------------------------------------------------------------------------

def i2h_proj_kernel(x_ref, w_ref, o_ref):
    """Step-invariant projection: (rows, I) @ (I, H) -> (rows, H)."""
    o_ref[...] = jnp.dot(
        x_ref[...], w_ref[...], preferred_element_type=jnp.float32
    ).astype(o_ref.dtype)


def attention_step_kernel(h_ref, c_ref, bhp_ref, bh_ref, oh_ref,
                          w_h2h_ref, b_h2h_ref, w_score_ref,
                          w_gates_ref, b_gates_ref,
                          h_out_ref, c_out_ref, alpha_out_ref,
                          *, trans_dtype):
    h_new, c_new, alpha = _attention_cell_math(
        h_ref[...], c_ref[...], bhp_ref[...], bh_ref[...], oh_ref[...],
        w_h2h_ref[...], b_h2h_ref[...], w_score_ref[...],
        w_gates_ref[...], b_gates_ref[...], trans_dtype)
    h_out_ref[...] = h_new.astype(h_out_ref.dtype)
    c_out_ref[...] = c_new.astype(c_out_ref.dtype)
    alpha_out_ref[...] = alpha.astype(alpha_out_ref.dtype)


def attention_decode_kernel(h0_ref, c0_ref, bhp_ref, bh_ref, oh_ref,
                            w_h2h_ref, b_h2h_ref, w_score_ref,
                            w_gates_ref, b_gates_ref,
                            hid_out_ref, alpha_out_ref, h_out_ref, c_out_ref,
                            *, trans_dtype):
    """One decode step per grid point; weights/bhp/batch_H blocks have constant
    index maps (VMEM-resident across the step axis), h/c carried in the
    resident h_out/c_out blocks."""
    step = pl.program_id(1)

    @pl.when(step == 0)
    def _():
        # Seed the VMEM-resident carried state from the initial hidden/cell.
        h_out_ref[...] = h0_ref[...]
        c_out_ref[...] = c0_ref[...]

    h_new, c_new, alpha = _attention_cell_math(
        h_out_ref[...], c_out_ref[...], bhp_ref[...], bh_ref[...], oh_ref[...],
        w_h2h_ref[...], b_h2h_ref[...], w_score_ref[...],
        w_gates_ref[...], b_gates_ref[...], trans_dtype)

    h_out_ref[...] = h_new.astype(h_out_ref.dtype)
    c_out_ref[...] = c_new.astype(c_out_ref.dtype)
    hid_out_ref[...] = h_new.astype(hid_out_ref.dtype)
    alpha_out_ref[...] = alpha.astype(alpha_out_ref.dtype)


# ---------------------------------------------------------------------------
# Wrappers
# ---------------------------------------------------------------------------

def prepare_params(params, compute_dtype=jnp.float32):
    """One-time weight prep (transposes / gate fusion / reorder).  Call ONCE,
    outside any per-character decode loop."""
    w_ih = params["w_ih"]                                  # (4H, I+E)
    w_hh = params["w_hh"]                                  # (4H, H)
    Hs = w_hh.shape[1]
    I = params["w_i2h"].shape[1]
    # Fused gate weight for x_cat = [context (I), h (H), onehots (E)].
    w_gates = jnp.concatenate([w_ih[:, :I], w_hh, w_ih[:, I:]], axis=1)
    return {
        "w_i2h": params["w_i2h"].T.astype(compute_dtype),            # (I, H)
        "w_h2h": params["w_h2h"].T.astype(compute_dtype),            # (H, H)
        "b_h2h": params["b_h2h"].reshape(1, Hs).astype(jnp.float32),
        "w_score": params["w_score"].reshape(1, Hs).astype(jnp.float32),
        "w_gates": w_gates.T.astype(compute_dtype),                  # (I+H+E, 4H)
        "b_gates": (params["b_ih"] + params["b_hh"]).reshape(1, 4 * Hs)
                   .astype(jnp.float32),
    }


def precompute_batch_H_proj(batch_H, prepped, out_dtype=jnp.bfloat16):
    """bhp = i2h(batch_H): step-invariant -> compute once per decoded sequence.
    bf16 storage by default (only ever a tanh argument) halves its HBM/VMEM
    footprint."""
    B, T, I = batch_H.shape
    w = prepped["w_i2h"]
    Hs = w.shape[1]
    rows = B * T
    x = batch_H.reshape(rows, I).astype(w.dtype)

    TR = min(rows, 1024) if rows % 8 == 0 else rows     # memory-bound: big tiles
    grid = (pl.cdiv(rows, TR),)

    out = pl.pallas_call(
        i2h_proj_kernel,
        grid=grid,
        in_specs=[
            pl.BlockSpec((TR, I), lambda r: (r, 0)),
            pl.BlockSpec((I, Hs), lambda r: (0, 0)),
        ],
        out_specs=pl.BlockSpec((TR, Hs), lambda r: (r, 0)),
        out_shape=jax.ShapeDtypeStruct((rows, Hs), out_dtype),
        compiler_params=pltpu.CompilerParams(
            dimension_semantics=("parallel",),
            vmem_limit_bytes=_vmem_limit_bytes(),
        ),
    )(x, w)
    return out.reshape(B, T, Hs)


def attention_cell_step(prev_hidden, batch_H, char_onehots, prepped, batch_H_proj,
                        *, trans_dtype=jnp.float32, num_cores=None):
    """One AttentionCell step.  Returns ((h', c'), alpha) with alpha (B, T, 1)."""
    h, c = prev_hidden
    B, T, I = batch_H.shape
    Hs = h.shape[1]
    E = char_onehots.shape[1]
    Kf = I + Hs + E
    compute_dtype = prepped["w_gates"].dtype

    bh = batch_H.astype(compute_dtype)
    oh = char_onehots.astype(jnp.float32)

    nc = num_cores if num_cores is not None else _num_tensorcores()
    TB = _pick_batch_tile(B, nc)
    grid = (pl.cdiv(B, TB),)

    bmap2 = lambda b: (b, 0)
    bmap3 = lambda b: (b, 0, 0)
    wmap2 = lambda b: (0, 0)

    kernel = functools.partial(attention_step_kernel, trans_dtype=trans_dtype)

    h_new, c_new, alpha = pl.pallas_call(
        kernel,
        grid=grid,
        in_specs=[
            pl.BlockSpec((TB, Hs), bmap2),        # h
            pl.BlockSpec((TB, Hs), bmap2),        # c
            pl.BlockSpec((TB, T, Hs), bmap3),     # bhp (precomputed)
            pl.BlockSpec((TB, T, I), bmap3),      # batch_H
            pl.BlockSpec((TB, E), bmap2),         # char one-hots
            pl.BlockSpec((Hs, Hs), wmap2),        # w_h2h
            pl.BlockSpec((1, Hs), wmap2),         # b_h2h
            pl.BlockSpec((1, Hs), wmap2),         # w_score row
            pl.BlockSpec((Kf, 4 * Hs), wmap2),    # fused gate weight
            pl.BlockSpec((1, 4 * Hs), wmap2),     # fused gate bias
        ],
        out_specs=(
            pl.BlockSpec((TB, Hs), bmap2),
            pl.BlockSpec((TB, Hs), bmap2),
            pl.BlockSpec((TB, T), bmap2),         # lane-dense alpha
        ),
        out_shape=(
            jax.ShapeDtypeStruct((B, Hs), jnp.float32),
            jax.ShapeDtypeStruct((B, Hs), jnp.float32),
            jax.ShapeDtypeStruct((B, T), jnp.float32),
        ),
        compiler_params=pltpu.CompilerParams(
            dimension_semantics=("parallel",),
            vmem_limit_bytes=_vmem_limit_bytes(),
        ),
    )(
        h.astype(jnp.float32), c.astype(jnp.float32),
        batch_H_proj, bh, oh,
        prepped["w_h2h"], prepped["b_h2h"], prepped["w_score"],
        prepped["w_gates"], prepped["b_gates"],
    )
    return (h_new, c_new), alpha.reshape(B, T, 1)


def attention_decode(prev_hidden, batch_H, char_onehots_all, prepped, batch_H_proj,
                     *, trans_dtype=jnp.float32, num_cores=None):
    """Fused teacher-forced decode: ALL steps in one pallas_call.
    char_onehots_all: (N, B, E).  Returns (hiddens (N,B,H), alphas (N,B,T,1),
    (h_N, c_N)).  Each step is semantically identical to AttentionCell.forward.
    NOTE: on v7x (64 MiB VMEM), consider pipeline_mode=pl.Buffered(1) on the
    constant-index weight/bhp/batch_H specs to avoid double-buffering them."""
    h, c = prev_hidden
    N = char_onehots_all.shape[0]
    E = char_onehots_all.shape[2]
    B, T, I = batch_H.shape
    Hs = h.shape[1]
    Kf = I + Hs + E
    compute_dtype = prepped["w_gates"].dtype

    bh = batch_H.astype(compute_dtype)
    oh = char_onehots_all.astype(jnp.float32)

    nc = num_cores if num_cores is not None else _num_tensorcores()
    TB = _pick_batch_tile(B, nc)
    grid = (pl.cdiv(B, TB), N)          # batch parallel (v7x), steps sequential

    bmap2 = lambda b, t: (b, 0)
    bmap3 = lambda b, t: (b, 0, 0)
    wmap2 = lambda b, t: (0, 0)
    smap = lambda b, t: (t, b, 0)

    kernel = functools.partial(attention_decode_kernel, trans_dtype=trans_dtype)

    hiddens, alphas, h_new, c_new = pl.pallas_call(
        kernel,
        grid=grid,
        in_specs=[
            pl.BlockSpec((TB, Hs), bmap2),        # h0
            pl.BlockSpec((TB, Hs), bmap2),        # c0
            pl.BlockSpec((TB, T, Hs), bmap3),     # bhp        (resident across steps)
            pl.BlockSpec((TB, T, I), bmap3),      # batch_H    (resident across steps)
            pl.BlockSpec((None, TB, E), smap),    # one-hots for step t
            pl.BlockSpec((Hs, Hs), wmap2),        # w_h2h      (resident)
            pl.BlockSpec((1, Hs), wmap2),         # b_h2h
            pl.BlockSpec((1, Hs), wmap2),         # w_score row
            pl.BlockSpec((Kf, 4 * Hs), wmap2),    # fused gate weight (resident)
            pl.BlockSpec((1, 4 * Hs), wmap2),     # fused gate bias
        ],
        out_specs=(
            pl.BlockSpec((None, TB, Hs), smap),   # hidden at each step
            pl.BlockSpec((None, TB, T), smap),    # alpha at each step (lane-dense)
            pl.BlockSpec((TB, Hs), bmap2),        # carried / final h
            pl.BlockSpec((TB, Hs), bmap2),        # carried / final c
        ),
        out_shape=(
            jax.ShapeDtypeStruct((N, B, Hs), jnp.float32),
            jax.ShapeDtypeStruct((N, B, T), jnp.float32),
            jax.ShapeDtypeStruct((B, Hs), jnp.float32),
            jax.ShapeDtypeStruct((B, Hs), jnp.float32),
        ),
        compiler_params=pltpu.CompilerParams(
            dimension_semantics=("parallel", "arbitrary"),
            vmem_limit_bytes=_vmem_limit_bytes(),
        ),
    )(
        h.astype(jnp.float32), c.astype(jnp.float32),
        batch_H_proj, bh, oh,
        prepped["w_h2h"], prepped["b_h2h"], prepped["w_score"],
        prepped["w_gates"], prepped["b_gates"],
    )
    return hiddens, alphas.reshape(N, B, T, 1), (h_new, c_new)


def attention_cell(prev_hidden, batch_H, char_onehots, params,
                   compute_dtype=jnp.float32, bhp_dtype=None,
                   trans_dtype=jnp.float32):
    """One-shot API matching the PyTorch module forward.  For a decode loop,
    call prepare_params / precompute_batch_H_proj once and reuse — or better,
    use attention_decode, which fuses all steps into a single pallas_call."""
    if bhp_dtype is None:
        bhp_dtype = jnp.float32 if compute_dtype == jnp.float32 else jnp.bfloat16
    prepped = prepare_params(params, compute_dtype)
    bhp = precompute_batch_H_proj(batch_H, prepped, out_dtype=bhp_dtype)
    return attention_cell_step(prev_hidden, batch_H, char_onehots, prepped, bhp,
                               trans_dtype=trans_dtype)


# ---------------------------------------------------------------------------
# Plain-JAX reference (mirrors the PyTorch module)
# ---------------------------------------------------------------------------

def attention_cell_ref(prev_hidden, batch_H, char_onehots, params):
    h, c = prev_hidden
    Hs = h.shape[1]
    bhp = jnp.einsum("bti,hi->bth", batch_H, params["w_i2h"])
    php = h @ params["w_h2h"].T + params["b_h2h"]
    e = jnp.einsum("bth,oh->bto", jnp.tanh(bhp + php[:, None, :]), params["w_score"])
    alpha = jax.nn.softmax(e, axis=1)
    context = jnp.einsum("bto,bti->bi", alpha, batch_H)
    concat = jnp.concatenate([context, char_onehots], axis=1)
    gates = concat @ params["w_ih"].T + params["b_ih"] + h @ params["w_hh"].T + params["b_hh"]
    i_g = jax.nn.sigmoid(gates[:, 0 * Hs:1 * Hs])
    f_g = jax.nn.sigmoid(gates[:, 1 * Hs:2 * Hs])
    g_g = jnp.tanh(gates[:, 2 * Hs:3 * Hs])
    o_g = jax.nn.sigmoid(gates[:, 3 * Hs:4 * Hs])
    c_new = f_g * c + i_g * g_g
    h_new = o_g * jnp.tanh(c_new)
    return (h_new, c_new), alpha


# ---------------------------------------------------------------------------
# Test (toy shapes — see perf notes: tune tiling only at production shapes)
# ---------------------------------------------------------------------------

if __name__ == "__main__":
    B, T = 2, 8
    input_size = 32
    hidden_size = 32
    num_embeddings = 8
    num_steps = 3

    key = jax.random.PRNGKey(0)
    keys = jax.random.split(key, 16)

    s = 0.1
    params = {
        "w_i2h": s * jax.random.normal(keys[0], (hidden_size, input_size), jnp.float32),
        "w_h2h": s * jax.random.normal(keys[1], (hidden_size, hidden_size), jnp.float32),
        "b_h2h": s * jax.random.normal(keys[2], (hidden_size,), jnp.float32),
        "w_score": s * jax.random.normal(keys[3], (1, hidden_size), jnp.float32),
        "w_ih": s * jax.random.normal(keys[4], (4 * hidden_size, input_size + num_embeddings), jnp.float32),
        "b_ih": s * jax.random.normal(keys[5], (4 * hidden_size,), jnp.float32),
        "w_hh": s * jax.random.normal(keys[6], (4 * hidden_size, hidden_size), jnp.float32),
        "b_hh": s * jax.random.normal(keys[7], (4 * hidden_size,), jnp.float32),
    }

    h0 = jax.random.normal(keys[8], (B, hidden_size), jnp.float32)
    c0 = jax.random.normal(keys[9], (B, hidden_size), jnp.float32)
    batch_H = jax.random.normal(keys[10], (B, T, input_size), jnp.float32)

    ids = jax.random.randint(keys[11], (num_steps, B), 0, num_embeddings)
    onehots_all = jax.nn.one_hot(ids, num_embeddings, dtype=jnp.float32)  # (N,B,E)

    # ---- f32 path: single-step kernel, weights + i2h projection prepared once.
    prepped = prepare_params(params, compute_dtype=jnp.float32)
    bhp = precompute_batch_H_proj(batch_H, prepped, out_dtype=jnp.float32)
    step_fn = jax.jit(functools.partial(attention_cell_step, trans_dtype=jnp.float32))

    state = (h0, c0)
    state_ref = (h0, c0)
    for t_idx in range(2):
        oh = onehots_all[t_idx]
        state, alpha = step_fn(state, batch_H, oh, prepped, bhp)
        state_ref, alpha_ref = attention_cell_ref(state_ref, batch_H, oh, params)
        jax.block_until_ready((state, alpha))
        assert jnp.allclose(state[0], state_ref[0], atol=5e-3, rtol=5e-3), "hidden mismatch (f32)"
        assert jnp.allclose(state[1], state_ref[1], atol=5e-3, rtol=5e-3), "cell mismatch (f32)"
        assert jnp.allclose(alpha, alpha_ref, atol=5e-3, rtol=5e-3), "alpha mismatch (f32)"
        assert alpha.shape == (B, T, 1)

    # ---- fused decode: all steps in ONE pallas_call (the big perf win).
    hiddens, alphas, (hN, cN) = attention_decode(
        (h0, c0), batch_H, onehots_all, prepped, bhp, trans_dtype=jnp.float32)
    jax.block_until_ready((hiddens, alphas, hN, cN))
    st = (h0, c0)
    for t_idx in range(num_steps):
        st, a_ref = attention_cell_ref(st, batch_H, onehots_all[t_idx], params)
        assert jnp.allclose(hiddens[t_idx], st[0], atol=5e-3, rtol=5e-3), "decode hidden mismatch"
        assert jnp.allclose(alphas[t_idx], a_ref, atol=5e-3, rtol=5e-3), "decode alpha mismatch"
    assert jnp.allclose(hN, st[0], atol=5e-3, rtol=5e-3), "decode final h mismatch"
    assert jnp.allclose(cN, st[1], atol=5e-3, rtol=5e-3), "decode final c mismatch"

    # ---- mixed-precision path: bf16 MXU operands + bf16 bhp storage, and bf16
    #      transcendentals only where the EUP supports them (v6e/v7x).
    #      (For long decode sequences keep compute_dtype=f32 to bound h drift.)
    tdt = default_trans_dtype()
    prepped_bf16 = prepare_params(params, compute_dtype=jnp.bfloat16)
    bhp_bf16 = precompute_batch_H_proj(batch_H, prepped_bf16, out_dtype=jnp.bfloat16)
    (h1b, c1b), alpha_b = attention_cell_step((h0, c0), batch_H, onehots_all[0],
                                              prepped_bf16, bhp_bf16, trans_dtype=tdt)
    jax.block_until_ready((h1b, c1b, alpha_b))
    (h1r, c1r), alpha_r = attention_cell_ref((h0, c0), batch_H, onehots_all[0], params)
    assert jnp.allclose(h1b, h1r, atol=5e-2, rtol=5e-2), "hidden mismatch (bf16)"
    assert jnp.allclose(c1b, c1r, atol=5e-2, rtol=5e-2), "cell mismatch (bf16)"
    assert jnp.allclose(alpha_b, alpha_r, atol=5e-2, rtol=5e-2), "alpha mismatch (bf16)"

    print("KERNEL_OK")
</pallas_src>

<mosaic_0001>
module attributes {stable_mosaic.version = 11 : i64} {
  func.func @i2h_proj_kernel(%arg0: i32, %arg1: memref<16x32xf32, #tpu.memory_space<vmem>>, %arg2: memref<32x32xf32, #tpu.memory_space<vmem>>, %arg3: memref<16x32xf32, #tpu.memory_space<vmem>>) attributes {dimension_semantics = [#tpu.dimension_semantics<parallel>], iteration_bounds = array<i64: 1>, scalar_prefetch = 0 : i64, scratch_operands = 0 : i64, tpu.core_type = #tpu.core_type<tc>, window_params = [{transform_indices = @transform_0, window_bounds = array<i64: 16, 32>}, {pipeline_mode = #tpu.pipeline_mode<synchronous>, transform_indices = @transform_1, window_bounds = array<i64: 32, 32>}, {transform_indices = @transform_2, window_bounds = array<i64: 16, 32>}]} {
    %c0 = arith.constant 0 : index
    %c0_0 = arith.constant 0 : index
    %0 = vector.load %arg1[%c0, %c0_0] : memref<16x32xf32, #tpu.memory_space<vmem>>, vector<16x32xf32>
    %c0_1 = arith.constant 0 : index
    %c0_2 = arith.constant 0 : index
    %1 = vector.load %arg2[%c0_1, %c0_2] : memref<32x32xf32, #tpu.memory_space<vmem>>, vector<32x32xf32>
    %cst = arith.constant dense<0.000000e+00> : vector<16x32xf32>
    %2 = tpu.matmul %0, %1, %cst {dimension_numbers = #tpu.dot_dimension_numbers<[1], [0], [0], [1], [0, 0, 1, 1], [], []>} : vector<16x32xf32>, vector<32x32xf32>, vector<16x32xf32> -> vector<16x32xf32>
    %c0_3 = arith.constant 0 : index
    %c0_4 = arith.constant 0 : index
    %3 = vector.load %arg3[%c0_3, %c0_4] : memref<16x32xf32, #tpu.memory_space<vmem>>, vector<16x32xf32>
    tpu.vector_store %arg3[%c0_3, %c0_4], %2 {strides = array<i32>} : memref<16x32xf32, #tpu.memory_space<vmem>>, vector<16x32xf32>,
    return
  }
  func.func @transform_0(%arg0: i32) -> (i32, i32) {
    %c0_i32 = arith.constant 0 : i32
    %c0_i32_0 = arith.constant 0 : i32
    return %arg0, %c0_i32 : i32, i32
  }
  func.func @transform_1(%arg0: i32) -> (i32, i32) {
    %c0_i32 = arith.constant 0 : i32
    %c0_i32_0 = arith.constant 0 : i32
    %c0_i32_1 = arith.constant 0 : i32
    return %c0_i32, %c0_i32_0 : i32, i32
  }
  func.func @transform_2(%arg0: i32) -> (i32, i32) {
    %c0_i32 = arith.constant 0 : i32
    %c0_i32_0 = arith.constant 0 : i32
    return %arg0, %c0_i32 : i32, i32
  }
}

</mosaic_0001>

<llo_original>
// kernel: tpu_custom_call.1
$region0: #{tpu_custom_call.1}
  #allocation0 [shape = 'u32[]', space=smem, size = 0x4, offset = 0x4, fixed_abs, tag = 'smem constant byte address 0x4 - core index']
  #allocation1 [shape = 'u32[144,128]{1,0:T(1,128)}', space=vmem, size = 0x12000, scoped, tag = 'internal scratch']
  %s0 = inlined_call_operand.hbm [shape: f32[16,32], index: 0, kind: input, shape index: {}]
  %s1 = inlined_call_operand.hbm [shape: f32[32,32], index: 1, kind: input, shape index: {}]
  %s2 = inlined_call_operand.hbm [shape: f32[16,32], index: 2, kind: output, shape index: {}]
  %s3 = sld [smem:[#allocation0]]
  $region26: #{tpu_custom_call.1} parent=0
    _
  %s5 = ssub.s32 1, %s3
  %s6 = scalar_select 0, %s5, %s3
  $region1: #{tpu_custom_call.1} parent=0
    #allocation2 [shape = 'u8[8192]{0}', space=vmem, size = 0x2000, scoped, tag = 'input window, operand 0, single buffered']
    #allocation3 [shape = 's32[1]{0}', space=sflag, size = 0x4, scoped, tag = 'scoped memory for tpu_custom_call.1']
    #allocation4 [shape = 's32[1]{0}', space=sflag, size = 0x4, scoped, tag = 'scoped memory for tpu_custom_call.1']
    #allocation5 [shape = 'u8[16384]{0}', space=vmem, size = 0x4000, scoped, tag = 'input window, operand 1, single buffered']
    #allocation6 [shape = 's32[1]{0}', space=sflag, size = 0x4, scoped, tag = 'scoped memory for tpu_custom_call.1']
    #allocation7 [shape = 'u8[8192]{0}', space=vmem, size = 0x2000, scoped, tag = 'output window, operand 0, single buffered']
    %7 = vsyncpa [#allocation3], 0
    %8 = vsyncpa [#allocation6], 0
    %9 = vsyncpa [#allocation4], 0
    // Predicated region
    $region2: #{tpu_custom_call.1} parent=1 // pred_check
      _
    $region3: #{tpu_custom_call.1} parent=1 // pred_check_branch
      %11 = sbr.rel (0) target = $region5
    $region4: #{tpu_custom_call.1} parent=1 // pred_region
      %s13 = ssub.s32 256, 256
      %14 = vsyncadd [#allocation3], %s13
      %s15 = sshll.u32 [#allocation2], 4
      %s16 = int_to_ptr.vmem [resolvable:$true] %s15
      %21 = dma.hbm_to_vmem [thread:$0]  %s0, 256, %s16, [#allocation3], 128, 128, 8
    $region5: #{tpu_custom_call.1} parent=1 // pred_fallthru
      _
    // Predicated region
    $region6: #{tpu_custom_call.1} parent=1 // pred_check
      _
    $region7: #{tpu_custom_call.1} parent=1 // pred_check_branch
      %23 = sbr.rel (0) target = $region9
    $region8: #{tpu_custom_call.1} parent=1 // pred_region
      %s25 = ssub.s32 512, 512
      %26 = vsyncadd [#allocation6], %s25
      %s27 = sshll.u32 [#allocation5], 4
      %s28 = int_to_ptr.vmem [resolvable:$true] %s27
      %33 = dma.hbm_to_vmem [thread:$0]  %s1, 512, %s28, [#allocation6], 128, 128, 8
    $region9: #{tpu_custom_call.1} parent=1 // pred_fallthru
      _
    // Predicated region
    $region10: #{tpu_custom_call.1} parent=1 // pred_check
      _
    $region11: #{tpu_custom_call.1} parent=1 // pred_check_branch
      %35 = sbr.rel (0) target = $region13
    $region12: #{tpu_custom_call.1} parent=1 // pred_region
      %36 = dma.done [#allocation3], 256
    $region13: #{tpu_custom_call.1} parent=1 // pred_fallthru
      _
    // Predicated region
    $region14: #{tpu_custom_call.1} parent=1 // pred_check
      _
    $region15: #{tpu_custom_call.1} parent=1 // pred_check_branch
      %38 = sbr.rel (0) target = $region17
    $region16: #{tpu_custom_call.1} parent=1 // pred_region
      %39 = dma.done [#allocation6], 512
    $region17: #{tpu_custom_call.1} parent=1 // pred_fallthru
      _
    %v40 = vld [vmem:[#allocation2] sm:$0xff]
    %v41 = vld [vmem:[#allocation2 + $0x8] sm:$0xff]
    %v42 = vld [vmem:[#allocation5] sm:$0xff]
    %v43 = vld [vmem:[#allocation5 + $0x8] sm:$0xff]
    %v44 = vld [vmem:[#allocation5 + $0x10] sm:$0xff]
    %v45 = vld [vmem:[#allocation5 + $0x18] sm:$0xff]
    %vm46 = vcmask 261120
    %v48 = vsel %vm46, %v40, 0
    %v51 = vsel %vm46, %v41, 0
    %53 = vmatprep.subr.mxu0 0.0
    %54 = vmatpush1.msra.mxu0 %v42
    %55 = vmatprep.subr.mxu0 0.0
    %56 = vmatpush1.msra.mxu0 %v43
    %57 = vmatprep.subr.mxu0 0.0
    %58 = vmatpush1.msra.mxu0 %v44
    %59 = vmatprep.subr.mxu0 0.0
    %60 = vmatpush1.msra.mxu0 %v45
    %61 = vmatprep.subr.mxu0 0.0
    %62 = vmatpush1.msra.mxu0 0.0
    %63 = vmatprep.subr.mxu0 0.0
    %64 = vmatpush1.msra.mxu0 0.0
    %65 = vmatprep.subr.mxu0 0.0
    %66 = vmatpush1.msra.mxu0 0.0
    %67 = vmatprep.subr.mxu0 0.0
    %68 = vmatpush1.msra.mxu0 0.0
    %69 = vmatprep.subr.mxu0 0.0
    %70 = vmatpush1.msra.mxu0 0.0
    %71 = vmatprep.subr.mxu0 0.0
    %72 = vmatpush1.msra.mxu0 0.0
    %73 = vmatprep.subr.mxu0 0.0
    %74 = vmatpush1.msra.mxu0 0.0
    %75 = vmatprep.subr.mxu0 0.0
    %76 = vmatpush1.msra.mxu0 0.0
    %77 = vmatprep.subr.mxu0 0.0
    %78 = vmatpush1.msra.mxu0 0.0
    %79 = vmatprep.subr.mxu0 0.0
    %80 = vmatpush1.msra.mxu0 0.0
    %81 = vmatprep.subr.mxu0 0.0
    %82 = vmatpush1.msra.mxu0 0.0
    %83 = vmatprep.subr.mxu0 0.0
    %84 = vmatpush1.msra.mxu0 0.0
    %85 = vmatprep.subr.mxu0 0.0
    %86 = vmatpush1.msra.mxu0 0.0
    %87 = vmatprep.subr.mxu0 0.0
    %88 = vmatpush1.msra.mxu0 0.0
    %89 = vmatprep.subr.mxu0 0.0
    %90 = vmatpush1.msra.mxu0 0.0
    %91 = vmatprep.subr.mxu0 0.0
    %92 = vmatpush1.msra.mxu0 0.0
    %93 = vmatprep.subr.mxu0 0.0
    %94 = vmatpush1.msra.mxu0 0.0
    %95 = vmatprep.subr.mxu0 0.0
    %96 = vmatpush1.msra.mxu0 0.0
    %97 = vmatprep.subr.mxu0 0.0
    %98 = vmatpush1.msra.mxu0 0.0
    %99 = vmatprep.subr.mxu0 0.0
    %100 = vmatpush1.msra.mxu0 0.0
    %101 = vmatprep.subr.mxu0 0.0
    %102 = vmatpush1.msra.mxu0 0.0
    %103 = vmatprep.subr.mxu0 0.0
    %104 = vmatpush1.msra.mxu0 0.0
    %105 = vmatprep.subr.mxu0 0.0
    %106 = vmatpush1.msra.mxu0 0.0
    %107 = vmatprep.subr.mxu0 0.0
    %108 = vmatpush1.msra.mxu0 0.0
    %109 = vmatprep.subr.mxu0 0.0
    %110 = vmatpush1.msra.mxu0 0.0
    %111 = vmatprep.subr.mxu0 0.0
    %112 = vmatpush1.msra.mxu0 0.0
    %113 = vmatprep.subr.mxu0 0.0
    %114 = vmatpush1.msra.mxu0 0.0
    %115 = vmatprep.subr.mxu0 0.0
    %116 = vmatpush1.msra.mxu0 0.0
    %117 = vmatprep.mubr.f32.mxu0 0.0
    %118 = vmatmul.mubr.f32.gmra.mrb[0].mxu0 %v48
    %v119 = vpop.f32.mrb[0].mxu0
    %v120 = vadd.f32 0.0, %v119
    %v121 = vpop.f32.mrb[0].mxu0
    %122 = vmatprep.mubr.f32.mxu0 0.0
    %123 = vmatmul.mubr.f32.gmra.mrb[0].mxu0 %v51
    %v124 = vpop.f32.mrb[0].mxu0
    %v125 = vadd.f32 0.0, %v124
    %v126 = vpop.f32.mrb[0].mxu0
    %127 = vdwg.mxu0
    %128 = vst.msk [vmem:[#allocation7] sm:$0xff] %vm46, %v120
    %129 = vst.msk [vmem:[#allocation7 + $0x8] sm:$0xff] %vm46, %v125
    // Predicated region
    $region18: #{tpu_custom_call.1} parent=1 // pred_check
      _
    $region19: #{tpu_custom_call.1} parent=1 // pred_check_branch
      %131 = sbr.rel (0) target = $region21
    $region20: #{tpu_custom_call.1} parent=1 // pred_region
      %s133 = ssub.s32 256, 256
      %134 = vsyncadd [#allocation4], %s133
      %s135 = sshll.u32 [#allocation7], 4
      %s136 = int_to_ptr.vmem [resolvable:$true] %s135
      %141 = dma.vmem_to_hbm [thread:$0]  %s136, 256, %s2, [#allocation4], 128, 128, 8
    $region21: #{tpu_custom_call.1} parent=1 // pred_fallthru
      _
    // Predicated region
    $region22: #{tpu_custom_call.1} parent=1 // pred_check
      _
    $region23: #{tpu_custom_call.1} parent=1 // pred_check_branch
      %143 = sbr.rel (0) target = $region25
    $region24: #{tpu_custom_call.1} parent=1 // pred_region
      %144 = dma.done [#allocation4], 256
    $region25: #{tpu_custom_call.1} parent=1 // pred_fallthru
      _
    %145 = vsyncpa [#allocation3], 1
    %146 = vsyncpa [#allocation6], 1
    %147 = vsyncpa [#allocation4], 1

</llo_original>
